<compile_context>
chip_gen: v7x
topology: tpu7x:2x2x1
jax: 0.10.0
libtpu: 0.0.40
codegen_flags: <defaults>
</compile_context>

<pallas_src>
import functools
import math

import jax
import jax.numpy as jnp
from jax.experimental import pallas as pl
from jax.experimental.pallas import tpu as pltpu

_MIB = 1024 * 1024


def _pick_tile(dim, target, align):
    """Largest `align`-aligned divisor of `dim` that is <= target; else the full dim."""
    if dim <= target:
        return dim
    t = (target // align) * align
    while t >= align:
        if dim % t == 0:
            return t
        t -= align
    return dim


def _vmem_limit(footprint_bytes):
    # Leave headroom for compiler-internal scratch; 48 MiB cap is safe on v7x (64 MiB/TC).
    return int(min(max(2 * footprint_bytes, 32 * _MIB), 48 * _MIB))


def _attn_tile_defaults():
    """(tq, tkv) defaults per generation.  v5e: 128-wide MXU K, large VMEM -> big tq.
    v6e/v7x: 256-wide MXU K -> 256/256."""
    try:
        kind = jax.devices()[0].device_kind.lower()
    except Exception:
        kind = ""
    if "v5 lite" in kind or "v5e" in kind:
        return 512, 128
    return 256, 256


# ----------------------------- Tiled linear kernels ---------------------------------
def _linear_kernel(x_ref, w_ref, b_ref, o_ref, acc_ref, *, compute_dtype):
    @pl.when(pl.program_id(2) == 0)
    def _():
        acc_ref[...] = jnp.zeros_like(acc_ref)

    x = x_ref[...].astype(compute_dtype)
    w = w_ref[...].astype(compute_dtype)
    acc_ref[...] += jnp.dot(x, w, preferred_element_type=jnp.float32)

    @pl.when(pl.program_id(2) == pl.num_programs(2) - 1)
    def _():
        o_ref[...] = (acc_ref[...] + b_ref[...].astype(jnp.float32)).astype(o_ref.dtype)


def pallas_linear(x2d, w, b, *, out_dtype=None, compute_dtype=jnp.bfloat16,
                  tm=512, tn=512, tk=512):
    """x2d: (M, K), w: (K, N), b: (N,) -> (M, N).  Tiled, pipelined matmul, f32 acc."""
    M, K = x2d.shape
    K2, N = w.shape
    assert K == K2
    if out_dtype is None:
        out_dtype = x2d.dtype
    tm = _pick_tile(M, tm, 8)
    tn = _pick_tile(N, tn, 128)
    tk = _pick_tile(K, tk, 128)
    b2d = b.reshape(1, N)

    csz = jnp.dtype(compute_dtype).itemsize
    osz = jnp.dtype(out_dtype).itemsize
    footprint = (2 * tm * tk * x2d.dtype.itemsize          # x blocks (double buffered)
                 + 2 * tk * tn * w.dtype.itemsize           # w blocks
                 + 2 * tn * 4                               # bias block
                 + 2 * tm * tn * osz                        # output block
                 + tm * tn * 4                              # f32 accumulator scratch
                 + (tm * tk + tk * tn) * csz)               # cast temporaries

    kern = functools.partial(_linear_kernel, compute_dtype=compute_dtype)
    return pl.pallas_call(
        kern,
        out_shape=jax.ShapeDtypeStruct((M, N), out_dtype),
        grid_spec=pltpu.PrefetchScalarGridSpec(
            num_scalar_prefetch=0,
            grid=(M // tm, N // tn, K // tk),
            in_specs=[
                pl.BlockSpec((tm, tk), lambda i, j, k: (i, k)),
                pl.BlockSpec((tk, tn), lambda i, j, k: (k, j)),
                pl.BlockSpec((1, tn), lambda i, j, k: (0, j)),
            ],
            out_specs=pl.BlockSpec((tm, tn), lambda i, j, k: (i, j)),
            scratch_shapes=[pltpu.VMEM((tm, tn), jnp.float32)],
        ),
        compiler_params=pltpu.CompilerParams(
            dimension_semantics=("parallel", "parallel", "arbitrary"),
            vmem_limit_bytes=_vmem_limit(footprint),
        ),
    )(x2d, w, b2d)


def _qkv_linear_kernel(x_ref, w_ref, b_ref, o_ref, acc_ref, *, compute_dtype, head_dim):
    @pl.when(pl.program_id(2) == 0)
    def _():
        acc_ref[...] = jnp.zeros_like(acc_ref)

    x = x_ref[...].astype(compute_dtype)
    w = w_ref[...].astype(compute_dtype)
    acc_ref[...] += jnp.dot(x, w, preferred_element_type=jnp.float32)

    @pl.when(pl.program_id(2) == pl.num_programs(2) - 1)
    def _():
        out = (acc_ref[...] + b_ref[...].astype(jnp.float32)).astype(o_ref.dtype)  # (tm, tn)
        n_groups = o_ref.shape[0]
        # Finalize-only lane slices: split the (tm, tn) tile into tn//D per-head panels
        # and write them into the head-split (3H, M, D) output layout.
        for g in range(n_groups):
            o_ref[g] = out[:, g * head_dim:(g + 1) * head_dim]


def pallas_qkv_linear(x2d, w, b, *, head_dim, out_dtype, compute_dtype=jnp.bfloat16,
                      tm=512, tn=512, tk=512):
    """x2d (M, C) @ w (C, 3C) + b, emitted directly in head-split layout (3H, M, D).

    Output row group G = kk*H + h holds columns [kk*C + h*D, kk*C + (h+1)*D), i.e. the
    'B L (K H D) -> K H (B L) D' rearrange is fused into the matmul's out_spec so no
    separate HBM transpose is needed before the attention kernel.
    """
    M, K = x2d.shape
    K2, N = w.shape
    assert K == K2 and N % head_dim == 0
    n_groups_total = N // head_dim
    tm = _pick_tile(M, tm, 8)
    tn = _pick_tile(N, tn, math.lcm(128, head_dim))
    tk = _pick_tile(K, tk, 128)
    assert tn % head_dim == 0
    groups_per_block = tn // head_dim
    b2d = b.reshape(1, N)

    csz = jnp.dtype(compute_dtype).itemsize
    osz = jnp.dtype(out_dtype).itemsize
    footprint = (2 * tm * tk * x2d.dtype.itemsize
                 + 2 * tk * tn * w.dtype.itemsize
                 + 2 * tn * 4
                 + 2 * tm * tn * osz
                 + tm * tn * 4
                 + (tm * tk + tk * tn) * csz)

    kern = functools.partial(_qkv_linear_kernel, compute_dtype=compute_dtype,
                             head_dim=head_dim)
    return pl.pallas_call(
        kern,
        out_shape=jax.ShapeDtypeStruct((n_groups_total, M, head_dim), out_dtype),
        grid_spec=pltpu.PrefetchScalarGridSpec(
            num_scalar_prefetch=0,
            grid=(M // tm, N // tn, K // tk),
            in_specs=[
                pl.BlockSpec((tm, tk), lambda i, j, k: (i, k)),
                pl.BlockSpec((tk, tn), lambda i, j, k: (k, j)),
                pl.BlockSpec((1, tn), lambda i, j, k: (0, j)),
            ],
            out_specs=pl.BlockSpec((groups_per_block, tm, head_dim),
                                   lambda i, j, k: (j, i, 0)),
            scratch_shapes=[pltpu.VMEM((tm, tn), jnp.float32)],
        ),
        compiler_params=pltpu.CompilerParams(
            dimension_semantics=("parallel", "parallel", "arbitrary"),
            vmem_limit_bytes=_vmem_limit(footprint),
        ),
    )(x2d, w, b2d)


# --------------------------- Flash-style attention kernel --------------------------------
def _flash_mha_kernel(q_ref, k_ref, v_ref, o_ref, qs_ref, m_ref, l_ref, acc_ref,
                      *, scale, compute_dtype, approx_recip):
    # q_ref: (H, tq, D), k_ref/v_ref: (H, tkv, D), o_ref: (tq, H*D).
    ki = pl.program_id(2)

    @pl.when(ki == 0)
    def _():
        m_ref[...] = jnp.full_like(m_ref, -jnp.inf)
        l_ref[...] = jnp.zeros_like(l_ref)
        acc_ref[...] = jnp.zeros_like(acc_ref)
        # Fold the softmax scale into q once per q tile and hoist the compute-dtype cast
        # out of the kv loop (VPU/EUP relief; exp is the binding unit with D=64 + bf16).
        qs_ref[...] = (q_ref[...].astype(jnp.float32) * scale).astype(qs_ref.dtype)

    q = qs_ref[...]                             # (H, tq, D), pre-scaled, compute dtype
    k = k_ref[...].astype(compute_dtype)        # (H, tkv, D)
    v = v_ref[...].astype(compute_dtype)

    # Batched over heads; contracts last dims directly (no k.T materialized).
    s = jnp.einsum("hqd,hkd->hqk", q, k,
                   preferred_element_type=jnp.float32)               # (H, tq, tkv) f32

    m_prev = m_ref[...]                                               # (H, tq, 1)
    m_new = jnp.maximum(m_prev, jnp.max(s, axis=-1, keepdims=True))
    alpha = jnp.exp(m_prev - m_new)
    p = jnp.exp(s - m_new)                                            # f32
    l_ref[...] = alpha * l_ref[...] + jnp.sum(p, axis=-1, keepdims=True)
    pv = jnp.einsum("hqk,hkd->hqd", p.astype(compute_dtype), v,
                    preferred_element_type=jnp.float32)               # (H, tq, D) f32
    acc_ref[...] = alpha * acc_ref[...] + pv
    m_ref[...] = m_new

    @pl.when(ki == pl.num_programs(2) - 1)
    def _():
        if approx_recip:
            inv_l = pl.reciprocal(l_ref[...], approx=True)
        else:
            inv_l = 1.0 / l_ref[...]            # exact; only H*tq divisions, negligible
        o = (acc_ref[...] * inv_l).astype(o_ref.dtype)                # (H, tq, D)
        num_heads = o.shape[0]
        # Lane-dense (tq, H*D) store: fuses the 'B H L D -> B L (H D)' rearrange.
        o_ref[...] = jnp.concatenate([o[h] for h in range(num_heads)], axis=-1)


def pallas_mha(qkv, *, batch, seq_len, num_heads, head_dim, scale,
               out_dtype, compute_dtype=jnp.bfloat16, tq=None, tkv=None):
    """qkv: (3H, B*L, D) head-split activations.  Returns (B*L, H*D)."""
    GH, M, D = qkv.shape
    H = num_heads
    assert GH == 3 * H and D == head_dim and M == batch * seq_len
    C = H * D
    d_tq, d_tkv = _attn_tile_defaults()
    tq = _pick_tile(seq_len, tq or d_tq, 8)
    tkv = _pick_tile(seq_len, tkv or d_tkv, 8)
    nq = seq_len // tq
    nkv = seq_len // tkv

    isz = qkv.dtype.itemsize
    csz = jnp.dtype(compute_dtype).itemsize
    osz = jnp.dtype(out_dtype).itemsize
    footprint = (2 * H * tq * D * isz            # q blocks (double buffered)
                 + 2 * 2 * H * tkv * D * isz     # k, v blocks
                 + 2 * tq * C * osz              # output block
                 + H * tq * D * csz              # pre-scaled q scratch
                 + H * tq * (D + 2) * 4          # acc / m / l (f32)
                 + 3 * H * tq * tkv * 4)         # s / p / exp temporaries (f32)

    approx_recip = jnp.dtype(out_dtype) == jnp.dtype(jnp.bfloat16)
    kern = functools.partial(_flash_mha_kernel, scale=scale,
                             compute_dtype=compute_dtype, approx_recip=approx_recip)

    q_spec = pl.BlockSpec((H, tq, D), lambda b, qi, ki: (0, b * nq + qi, 0))
    k_spec = pl.BlockSpec((H, tkv, D), lambda b, qi, ki: (1, b * nkv + ki, 0))
    v_spec = pl.BlockSpec((H, tkv, D), lambda b, qi, ki: (2, b * nkv + ki, 0))
    o_spec = pl.BlockSpec((tq, C), lambda b, qi, ki: (b * nq + qi, 0))

    return pl.pallas_call(
        kern,
        out_shape=jax.ShapeDtypeStruct((M, C), out_dtype),
        grid_spec=pltpu.PrefetchScalarGridSpec(
            num_scalar_prefetch=0,
            grid=(batch, nq, nkv),
            in_specs=[q_spec, k_spec, v_spec],
            out_specs=o_spec,
            scratch_shapes=[
                pltpu.VMEM((H, tq, D), compute_dtype),   # pre-scaled q
                pltpu.VMEM((H, tq, 1), jnp.float32),     # running max m
                pltpu.VMEM((H, tq, 1), jnp.float32),     # running denom l
                pltpu.VMEM((H, tq, D), jnp.float32),     # output accumulator
            ],
        ),
        compiler_params=pltpu.CompilerParams(
            dimension_semantics=("parallel", "parallel", "arbitrary"),
            vmem_limit_bytes=_vmem_limit(footprint),
        ),
    )(qkv, qkv, qkv)


# ------------------------------ Module wrapper --------------------------------
def attention_forward(x, params, num_heads, *, compute_dtype=jnp.bfloat16):
    """x: (B, L, C) float32.  Mirrors torch Attention.forward ('math' mode, dropout p=0)."""
    B, L, C = x.shape
    H = num_heads
    D = C // H
    scale = D ** (-0.5)
    act_dtype = compute_dtype   # intermediate activations live in HBM in this dtype

    # Weights fed from HBM in the compute dtype (bf16 by default): halves weight DMA.
    w_qkv = params["w_qkv"].astype(compute_dtype)
    w_proj = params["w_proj"].astype(compute_dtype)

    x2d = x.reshape(B * L, C)
    # QKV projection emitted directly in head-split (3H, B*L, D) layout (no HBM transpose).
    qkv = pallas_qkv_linear(x2d, w_qkv, params["b_qkv"], head_dim=D,
                            out_dtype=act_dtype, compute_dtype=compute_dtype)
    # Flash attention; emits lane-dense (B*L, C) (no HBM transpose on the way out either).
    o2d = pallas_mha(qkv, batch=B, seq_len=L, num_heads=H, head_dim=D, scale=scale,
                     out_dtype=act_dtype, compute_dtype=compute_dtype)
    y = pallas_linear(o2d, w_proj, params["b_proj"],
                      out_dtype=x.dtype, compute_dtype=compute_dtype)
    return y.reshape(B, L, C)


def init_params(key, dim):
    k1, k2, k3 = jax.random.split(key, 3)
    s = 0.02
    return {
        # stored as (in, out) so forward is x @ W  (== torch x @ W_t.T)
        "w_qkv": s * jax.random.normal(k1, (dim, 3 * dim), jnp.float32),
        "b_qkv": jnp.zeros((3 * dim,), jnp.float32),   # qkv_bias=False
        "w_proj": s * jax.random.normal(k2, (dim, dim), jnp.float32),
        "b_proj": s * jax.random.normal(k3, (dim,), jnp.float32),
    }


def _reference(x, params, num_heads):
    B, L, C = x.shape
    H, D = num_heads, C // num_heads
    scale = D ** (-0.5)
    qkv = x @ params["w_qkv"] + params["b_qkv"]
    qkv = qkv.reshape(B, L, 3, H, D).transpose(2, 0, 3, 1, 4)
    q, k, v = qkv[0], qkv[1], qkv[2]
    attn = jax.nn.softmax((q @ jnp.swapaxes(k, -2, -1)) * scale, axis=-1)
    o = (attn @ v).transpose(0, 2, 1, 3).reshape(B, L, C)
    return o @ params["w_proj"] + params["b_proj"]


if __name__ == "__main__":
    B, L, C = 2, 8, 32
    num_heads = 8

    key = jax.random.PRNGKey(0)
    kx, kp = jax.random.split(key)
    x = jax.random.normal(kx, (B, L, C), jnp.float32)
    params = init_params(kp, C)

    ref = _reference(x, params, num_heads)

    # Default fast path: bf16 MXU operands from HBM, f32 accumulation / softmax state.
    out = attention_forward(x, params, num_heads)
    out = jax.block_until_ready(out)
    assert out.shape == (B, L, C)
    err = jnp.max(jnp.abs(out - ref))
    assert jnp.allclose(out, ref, atol=5e-2, rtol=5e-2), f"bf16 path max err {err}"

    # Strict f32 path (everything f32 end-to-end, exact reciprocal).
    out_f32 = attention_forward(x, params, num_heads, compute_dtype=jnp.float32)
    out_f32 = jax.block_until_ready(out_f32)
    err32 = jnp.max(jnp.abs(out_f32 - ref))
    assert jnp.allclose(out_f32, ref, atol=2e-3, rtol=2e-3), f"f32 path max err {err32}"

    print("KERNEL_OK")
</pallas_src>

<mosaic_0001>
module attributes {stable_mosaic.version = 11 : i64} {
  func.func @_qkv_linear_kernel(%arg0: i32, %arg1: i32, %arg2: i32, %arg3: memref<16x32xf32, #tpu.memory_space<vmem>>, %arg4: memref<32x96xbf16, #tpu.memory_space<vmem>>, %arg5: memref<1x96xf32, #tpu.memory_space<vmem>>, %arg6: memref<24x16x4xbf16, #tpu.memory_space<vmem>>, %arg7: memref<16x96xf32, #tpu.memory_space<vmem>>) attributes {dimension_semantics = [#tpu.dimension_semantics<parallel>, #tpu.dimension_semantics<parallel>, #tpu.dimension_semantics<arbitrary>], iteration_bounds = array<i64: 1, 1, 1>, scalar_prefetch = 0 : i64, scratch_operands = 1 : i64, tpu.core_type = #tpu.core_type<tc>, window_params = [{transform_indices = @transform_0, window_bounds = array<i64: 16, 32>}, {transform_indices = @transform_1, window_bounds = array<i64: 32, 96>}, {transform_indices = @transform_2, window_bounds = array<i64: 1, 96>}, {transform_indices = @transform_3, window_bounds = array<i64: 24, 16, 4>}]} {
    %c0_i32 = arith.constant 0 : i32
    %0 = arith.cmpi eq, %arg2, %c0_i32 : i32
    %1 = arith.extui %0 : i1 to i32
    %c0_i32_0 = arith.constant 0 : i32
    %2 = arith.cmpi ne, %1, %c0_i32_0 : i32
    scf.if %2 {
      %cst_10 = arith.constant 0.000000e+00 : f32
      %13 = vector.broadcast %cst_10 : f32 to vector<16x96xf32>
      %c0_11 = arith.constant 0 : index
      %c0_12 = arith.constant 0 : index
      %14 = vector.load %arg7[%c0_11, %c0_12] : memref<16x96xf32, #tpu.memory_space<vmem>>, vector<16x96xf32>
      tpu.vector_store %arg7[%c0_11, %c0_12], %13 {strides = array<i32>} : memref<16x96xf32, #tpu.memory_space<vmem>>, vector<16x96xf32>,
    } else {
    }
    %c0 = arith.constant 0 : index
    %c0_1 = arith.constant 0 : index
    %3 = vector.load %arg3[%c0, %c0_1] : memref<16x32xf32, #tpu.memory_space<vmem>>, vector<16x32xf32>
    %4 = arith.truncf %3 : vector<16x32xf32> to vector<16x32xbf16>
    %c0_2 = arith.constant 0 : index
    %c0_3 = arith.constant 0 : index
    %5 = vector.load %arg4[%c0_2, %c0_3] : memref<32x96xbf16, #tpu.memory_space<vmem>>, vector<32x96xbf16>
    %c0_4 = arith.constant 0 : index
    %c0_5 = arith.constant 0 : index
    %6 = vector.load %arg7[%c0_4, %c0_5] : memref<16x96xf32, #tpu.memory_space<vmem>>, vector<16x96xf32>
    %cst = arith.constant dense<0.000000e+00> : vector<16x96xf32>
    %7 = tpu.matmul %4, %5, %cst {dimension_numbers = #tpu.dot_dimension_numbers<[1], [0], [0], [1], [0, 0, 1, 1], [], []>} : vector<16x32xbf16>, vector<32x96xbf16>, vector<16x96xf32> -> vector<16x96xf32>
    %8 = arith.addf %6, %7 : vector<16x96xf32>
    %c0_6 = arith.constant 0 : index
    %c0_7 = arith.constant 0 : index
    %9 = vector.load %arg7[%c0_6, %c0_7] : memref<16x96xf32, #tpu.memory_space<vmem>>, vector<16x96xf32>
    tpu.vector_store %arg7[%c0_6, %c0_7], %8 {strides = array<i32>} : memref<16x96xf32, #tpu.memory_space<vmem>>, vector<16x96xf32>,
    %c0_i32_8 = arith.constant 0 : i32
    %10 = arith.cmpi eq, %arg2, %c0_i32_8 : i32
    %11 = arith.extui %10 : i1 to i32
    %c0_i32_9 = arith.constant 0 : i32
    %12 = arith.cmpi ne, %11, %c0_i32_9 : i32
    scf.if %12 {
      %c0_10 = arith.constant 0 : index
      %c0_11 = arith.constant 0 : index
      %13 = vector.load %arg7[%c0_10, %c0_11] : memref<16x96xf32, #tpu.memory_space<vmem>>, vector<16x96xf32>
      %c0_12 = arith.constant 0 : index
      %c0_13 = arith.constant 0 : index
      %14 = vector.load %arg5[%c0_12, %c0_13] : memref<1x96xf32, #tpu.memory_space<vmem>>, vector<1x96xf32>
      %15 = vector.broadcast %14 : vector<1x96xf32> to vector<16x96xf32>
      %16 = arith.addf %13, %15 : vector<16x96xf32>
      %17 = arith.truncf %16 : vector<16x96xf32> to vector<16x96xbf16>
      %18 = vector.extract_strided_slice %17 {offsets = [0, 0], sizes = [16, 4], strides = [1, 1]} : vector<16x96xbf16> to vector<16x4xbf16>
      %c0_14 = arith.constant 0 : index
      %c0_15 = arith.constant 0 : index
      %c0_16 = arith.constant 0 : index
      %19 = vector.load %arg6[%c0_14, %c0_15, %c0_16] : memref<24x16x4xbf16, #tpu.memory_space<vmem>>, vector<1x16x4xbf16>
      %20 = vector.shape_cast %19 : vector<1x16x4xbf16> to vector<16x4xbf16>
      %21 = vector.shape_cast %18 : vector<16x4xbf16> to vector<1x16x4xbf16>
      tpu.vector_store %arg6[%c0_14, %c0_15, %c0_16], %21 {strides = array<i32>} : memref<24x16x4xbf16, #tpu.memory_space<vmem>>, vector<1x16x4xbf16>,
      %22 = vector.extract_strided_slice %17 {offsets = [0, 4], sizes = [16, 4], strides = [1, 1]} : vector<16x96xbf16> to vector<16x4xbf16>
      %c1 = arith.constant 1 : index
      %c0_17 = arith.constant 0 : index
      %c0_18 = arith.constant 0 : index
      %23 = vector.load %arg6[%c1, %c0_17, %c0_18] : memref<24x16x4xbf16, #tpu.memory_space<vmem>>, vector<1x16x4xbf16>
      %24 = vector.shape_cast %23 : vector<1x16x4xbf16> to vector<16x4xbf16>
      %25 = vector.shape_cast %22 : vector<16x4xbf16> to vector<1x16x4xbf16>
      tpu.vector_store %arg6[%c1, %c0_17, %c0_18], %25 {strides = array<i32>} : memref<24x16x4xbf16, #tpu.memory_space<vmem>>, vector<1x16x4xbf16>,
      %26 = vector.extract_strided_slice %17 {offsets = [0, 8], sizes = [16, 4], strides = [1, 1]} : vector<16x96xbf16> to vector<16x4xbf16>
      %c2 = arith.constant 2 : index
      %c0_19 = arith.constant 0 : index
      %c0_20 = arith.constant 0 : index
      %27 = vector.load %arg6[%c2, %c0_19, %c0_20] : memref<24x16x4xbf16, #tpu.memory_space<vmem>>, vector<1x16x4xbf16>
      %28 = vector.shape_cast %27 : vector<1x16x4xbf16> to vector<16x4xbf16>
      %29 = vector.shape_cast %26 : vector<16x4xbf16> to vector<1x16x4xbf16>
      tpu.vector_store %arg6[%c2, %c0_19, %c0_20], %29 {strides = array<i32>} : memref<24x16x4xbf16, #tpu.memory_space<vmem>>, vector<1x16x4xbf16>,
      %30 = vector.extract_strided_slice %17 {offsets = [0, 12], sizes = [16, 4], strides = [1, 1]} : vector<16x96xbf16> to vector<16x4xbf16>
      %c3 = arith.constant 3 : index
      %c0_21 = arith.constant 0 : index
      %c0_22 = arith.constant 0 : index
      %31 = vector.load %arg6[%c3, %c0_21, %c0_22] : memref<24x16x4xbf16, #tpu.memory_space<vmem>>, vector<1x16x4xbf16>
      %32 = vector.shape_cast %31 : vector<1x16x4xbf16> to vector<16x4xbf16>
      %33 = vector.shape_cast %30 : vector<16x4xbf16> to vector<1x16x4xbf16>
      tpu.vector_store %arg6[%c3, %c0_21, %c0_22], %33 {strides = array<i32>} : memref<24x16x4xbf16, #tpu.memory_space<vmem>>, vector<1x16x4xbf16>,
      %34 = vector.extract_strided_slice %17 {offsets = [0, 16], sizes = [16, 4], strides = [1, 1]} : vector<16x96xbf16> to vector<16x4xbf16>
      %c4 = arith.constant 4 : index
      %c0_23 = arith.constant 0 : index
      %c0_24 = arith.constant 0 : index
      %35 = vector.load %arg6[%c4, %c0_23, %c0_24] : memref<24x16x4xbf16, #tpu.memory_space<vmem>>, vector<1x16x4xbf16>
      %36 = vector.shape_cast %35 : vector<1x16x4xbf16> to vector<16x4xbf16>
      %37 = vector.shape_cast %34 : vector<16x4xbf16> to vector<1x16x4xbf16>
      tpu.vector_store %arg6[%c4, %c0_23, %c0_24], %37 {strides = array<i32>} : memref<24x16x4xbf16, #tpu.memory_space<vmem>>, vector<1x16x4xbf16>,
      %38 = vector.extract_strided_slice %17 {offsets = [0, 20], sizes = [16, 4], strides = [1, 1]} : vector<16x96xbf16> to vector<16x4xbf16>
      %c5 = arith.constant 5 : index
      %c0_25 = arith.constant 0 : index
      %c0_26 = arith.constant 0 : index
      %39 = vector.load %arg6[%c5, %c0_25, %c0_26] : memref<24x16x4xbf16, #tpu.memory_space<vmem>>, vector<1x16x4xbf16>
      %40 = vector.shape_cast %39 : vector<1x16x4xbf16> to vector<16x4xbf16>
      %41 = vector.shape_cast %38 : vector<16x4xbf16> to vector<1x16x4xbf16>
      tpu.vector_store %arg6[%c5, %c0_25, %c0_26], %41 {strides = array<i32>} : memref<24x16x4xbf16, #tpu.memory_space<vmem>>, vector<1x16x4xbf16>,
      %42 = vector.extract_strided_slice %17 {offsets = [0, 24], sizes = [16, 4], strides = [1, 1]} : vector<16x96xbf16> to vector<16x4xbf16>
      %c6 = arith.constant 6 : index
      %c0_27 = arith.constant 0 : index
      %c0_28 = arith.constant 0 : index
      %43 = vector.load %arg6[%c6, %c0_27, %c0_28] : memref<24x16x4xbf16, #tpu.memory_space<vmem>>, vector<1x16x4xbf16>
      %44 = vector.shape_cast %43 : vector<1x16x4xbf16> to vector<16x4xbf16>
      %45 = vector.shape_cast %42 : vector<16x4xbf16> to vector<1x16x4xbf16>
      tpu.vector_store %arg6[%c6, %c0_27, %c0_28], %45 {strides = array<i32>} : memref<24x16x4xbf16, #tpu.memory_space<vmem>>, vector<1x16x4xbf16>,
      %46 = vector.extract_strided_slice %17 {offsets = [0, 28], sizes = [16, 4], strides = [1, 1]} : vector<16x96xbf16> to vector<16x4xbf16>
      %c7 = arith.constant 7 : index
      %c0_29 = arith.constant 0 : index
      %c0_30 = arith.constant 0 : index
      %47 = vector.load %arg6[%c7, %c0_29, %c0_30] : memref<24x16x4xbf16, #tpu.memory_space<vmem>>, vector<1x16x4xbf16>
      %48 = vector.shape_cast %47 : vector<1x16x4xbf16> to vector<16x4xbf16>
      %49 = vector.shape_cast %46 : vector<16x4xbf16> to vector<1x16x4xbf16>
      tpu.vector_store %arg6[%c7, %c0_29, %c0_30], %49 {strides = array<i32>} : memref<24x16x4xbf16, #tpu.memory_space<vmem>>, vector<1x16x4xbf16>,
      %50 = vector.extract_strided_slice %17 {offsets = [0, 32], sizes = [16, 4], strides = [1, 1]} : vector<16x96xbf16> to vector<16x4xbf16>
      %c8 = arith.constant 8 : index
      %c0_31 = arith.constant 0 : index
      %c0_32 = arith.constant 0 : index
      %51 = vector.load %arg6[%c8, %c0_31, %c0_32] : memref<24x16x4xbf16, #tpu.memory_space<vmem>>, vector<1x16x4xbf16>
      %52 = vector.shape_cast %51 : vector<1x16x4xbf16> to vector<16x4xbf16>
      %53 = vector.shape_cast %50 : vector<16x4xbf16> to vector<1x16x4xbf16>
      tpu.vector_store %arg6[%c8, %c0_31, %c0_32], %53 {strides = array<i32>} : memref<24x16x4xbf16, #tpu.memory_space<vmem>>, vector<1x16x4xbf16>,
      %54 = vector.extract_strided_slice %17 {offsets = [0, 36], sizes = [16, 4], strides = [1, 1]} : vector<16x96xbf16> to vector<16x4xbf16>
      %c9 = arith.constant 9 : index
      %c0_33 = arith.constant 0 : index
      %c0_34 = arith.constant 0 : index
      %55 = vector.load %arg6[%c9, %c0_33, %c0_34] : memref<24x16x4xbf16, #tpu.memory_space<vmem>>, vector<1x16x4xbf16>
      %56 = vector.shape_cast %55 : vector<1x16x4xbf16> to vector<16x4xbf16>
      %57 = vector.shape_cast %54 : vector<16x4xbf16> to vector<1x16x4xbf16>
      tpu.vector_store %arg6[%c9, %c0_33, %c0_34], %57 {strides = array<i32>} : memref<24x16x4xbf16, #tpu.memory_space<vmem>>, vector<1x16x4xbf16>,
      %58 = vector.extract_strided_slice %17 {offsets = [0, 40], sizes = [16, 4], strides = [1, 1]} : vector<16x96xbf16> to vector<16x4xbf16>
      %c10 = arith.constant 10 : index
      %c0_35 = arith.constant 0 : index
      %c0_36 = arith.constant 0 : index
      %59 = vector.load %arg6[%c10, %c0_35, %c0_36] : memref<24x16x4xbf16, #tpu.memory_space<vmem>>, vector<1x16x4xbf16>
      %60 = vector.shape_cast %59 : vector<1x16x4xbf16> to vector<16x4xbf16>
      %61 = vector.shape_cast %58 : vector<16x4xbf16> to vector<1x16x4xbf16>
      tpu.vector_store %arg6[%c10, %c0_35, %c0_36], %61 {strides = array<i32>} : memref<24x16x4xbf16, #tpu.memory_space<vmem>>, vector<1x16x4xbf16>,
      %62 = vector.extract_strided_slice %17 {offsets = [0, 44], sizes = [16, 4], strides = [1, 1]} : vector<16x96xbf16> to vector<16x4xbf16>
      %c11 = arith.constant 11 : index
      %c0_37 = arith.constant 0 : index
      %c0_38 = arith.constant 0 : index
      %63 = vector.load %arg6[%c11, %c0_37, %c0_38] : memref<24x16x4xbf16, #tpu.memory_space<vmem>>, vector<1x16x4xbf16>
      %64 = vector.shape_cast %63 : vector<1x16x4xbf16> to vector<16x4xbf16>
      %65 = vector.shape_cast %62 : vector<16x4xbf16> to vector<1x16x4xbf16>
      tpu.vector_store %arg6[%c11, %c0_37, %c0_38], %65 {strides = array<i32>} : memref<24x16x4xbf16, #tpu.memory_space<vmem>>, vector<1x16x4xbf16>,
      %66 = vector.extract_strided_slice %17 {offsets = [0, 48], sizes = [16, 4], strides = [1, 1]} : vector<16x96xbf16> to vector<16x4xbf16>
      %c12 = arith.constant 12 : index
      %c0_39 = arith.constant 0 : index
      %c0_40 = arith.constant 0 : index
      %67 = vector.load %arg6[%c12, %c0_39, %c0_40] : memref<24x16x4xbf16, #tpu.memory_space<vmem>>, vector<1x16x4xbf16>
      %68 = vector.shape_cast %67 : vector<1x16x4xbf16> to vector<16x4xbf16>
      %69 = vector.shape_cast %66 : vector<16x4xbf16> to vector<1x16x4xbf16>
      tpu.vector_store %arg6[%c12, %c0_39, %c0_40], %69 {strides = array<i32>} : memref<24x16x4xbf16, #tpu.memory_space<vmem>>, vector<1x16x4xbf16>,
      %70 = vector.extract_strided_slice %17 {offsets = [0, 52], sizes = [16, 4], strides = [1, 1]} : vector<16x96xbf16> to vector<16x4xbf16>
      %c13 = arith.constant 13 : index
      %c0_41 = arith.constant 0 : index
      %c0_42 = arith.constant 0 : index
      %71 = vector.load %arg6[%c13, %c0_41, %c0_42] : memref<24x16x4xbf16, #tpu.memory_space<vmem>>, vector<1x16x4xbf16>
      %72 = vector.shape_cast %71 : vector<1x16x4xbf16> to vector<16x4xbf16>
      %73 = vector.shape_cast %70 : vector<16x4xbf16> to vector<1x16x4xbf16>
      tpu.vector_store %arg6[%c13, %c0_41, %c0_42], %73 {strides = array<i32>} : memref<24x16x4xbf16, #tpu.memory_space<vmem>>, vector<1x16x4xbf16>,
      %74 = vector.extract_strided_slice %17 {offsets = [0, 56], sizes = [16, 4], strides = [1, 1]} : vector<16x96xbf16> to vector<16x4xbf16>
      %c14 = arith.constant 14 : index
      %c0_43 = arith.constant 0 : index
      %c0_44 = arith.constant 0 : index
      %75 = vector.load %arg6[%c14, %c0_43, %c0_44] : memref<24x16x4xbf16, #tpu.memory_space<vmem>>, vector<1x16x4xbf16>
      %76 = vector.shape_cast %75 : vector<1x16x4xbf16> to vector<16x4xbf16>
      %77 = vector.shape_cast %74 : vector<16x4xbf16> to vector<1x16x4xbf16>
      tpu.vector_store %arg6[%c14, %c0_43, %c0_44], %77 {strides = array<i32>} : memref<24x16x4xbf16, #tpu.memory_space<vmem>>, vector<1x16x4xbf16>,
      %78 = vector.extract_strided_slice %17 {offsets = [0, 60], sizes = [16, 4], strides = [1, 1]} : vector<16x96xbf16> to vector<16x4xbf16>
      %c15 = arith.constant 15 : index
      %c0_45 = arith.constant 0 : index
      %c0_46 = arith.constant 0 : index
      %79 = vector.load %arg6[%c15, %c0_45, %c0_46] : memref<24x16x4xbf16, #tpu.memory_space<vmem>>, vector<1x16x4xbf16>
      %80 = vector.shape_cast %79 : vector<1x16x4xbf16> to vector<16x4xbf16>
      %81 = vector.shape_cast %78 : vector<16x4xbf16> to vector<1x16x4xbf16>
      tpu.vector_store %arg6[%c15, %c0_45, %c0_46], %81 {strides = array<i32>} : memref<24x16x4xbf16, #tpu.memory_space<vmem>>, vector<1x16x4xbf16>,
      %82 = vector.extract_strided_slice %17 {offsets = [0, 64], sizes = [16, 4], strides = [1, 1]} : vector<16x96xbf16> to vector<16x4xbf16>
      %c16 = arith.constant 16 : index
      %c0_47 = arith.constant 0 : index
      %c0_48 = arith.constant 0 : index
      %83 = vector.load %arg6[%c16, %c0_47, %c0_48] : memref<24x16x4xbf16, #tpu.memory_space<vmem>>, vector<1x16x4xbf16>
      %84 = vector.shape_cast %83 : vector<1x16x4xbf16> to vector<16x4xbf16>
      %85 = vector.shape_cast %82 : vector<16x4xbf16> to vector<1x16x4xbf16>
      tpu.vector_store %arg6[%c16, %c0_47, %c0_48], %85 {strides = array<i32>} : memref<24x16x4xbf16, #tpu.memory_space<vmem>>, vector<1x16x4xbf16>,
      %86 = vector.extract_strided_slice %17 {offsets = [0, 68], sizes = [16, 4], strides = [1, 1]} : vector<16x96xbf16> to vector<16x4xbf16>
      %c17 = arith.constant 17 : index
      %c0_49 = arith.constant 0 : index
      %c0_50 = arith.constant 0 : index
      %87 = vector.load %arg6[%c17, %c0_49, %c0_50] : memref<24x16x4xbf16, #tpu.memory_space<vmem>>, vector<1x16x4xbf16>
      %88 = vector.shape_cast %87 : vector<1x16x4xbf16> to vector<16x4xbf16>
      %89 = vector.shape_cast %86 : vector<16x4xbf16> to vector<1x16x4xbf16>
      tpu.vector_store %arg6[%c17, %c0_49, %c0_50], %89 {strides = array<i32>} : memref<24x16x4xbf16, #tpu.memory_space<vmem>>, vector<1x16x4xbf16>,
      %90 = vector.extract_strided_slice %17 {offsets = [0, 72], sizes = [16, 4], strides = [1, 1]} : vector<16x96xbf16> to vector<16x4xbf16>
      %c18 = arith.constant 18 : index
      %c0_51 = arith.constant 0 : index
      %c0_52 = arith.constant 0 : index
      %91 = vector.load %arg6[%c18, %c0_51, %c0_52] : memref<24x16x4xbf16, #tpu.memory_space<vmem>>, vector<1x16x4xbf16>
      %92 = vector.shape_cast %91 : vector<1x16x4xbf16> to vector<16x4xbf16>
      %93 = vector.shape_cast %90 : vector<16x4xbf16> to vector<1x16x4xbf16>
      tpu.vector_store %arg6[%c18, %c0_51, %c0_52], %93 {strides = array<i32>} : memref<24x16x4xbf16, #tpu.memory_space<vmem>>, vector<1x16x4xbf16>,
      %94 = vector.extract_strided_slice %17 {offsets = [0, 76], sizes = [16, 4], strides = [1, 1]} : vector<16x96xbf16> to vector<16x4xbf16>
      %c19 = arith.constant 19 : index
      %c0_53 = arith.constant 0 : index
      %c0_54 = arith.constant 0 : index
      %95 = vector.load %arg6[%c19, %c0_53, %c0_54] : memref<24x16x4xbf16, #tpu.memory_space<vmem>>, vector<1x16x4xbf16>
      %96 = vector.shape_cast %95 : vector<1x16x4xbf16> to vector<16x4xbf16>
      %97 = vector.shape_cast %94 : vector<16x4xbf16> to vector<1x16x4xbf16>
      tpu.vector_store %arg6[%c19, %c0_53, %c0_54], %97 {strides = array<i32>} : memref<24x16x4xbf16, #tpu.memory_space<vmem>>, vector<1x16x4xbf16>,
      %98 = vector.extract_strided_slice %17 {offsets = [0, 80], sizes = [16, 4], strides = [1, 1]} : vector<16x96xbf16> to vector<16x4xbf16>
      %c20 = arith.constant 20 : index
      %c0_55 = arith.constant 0 : index
      %c0_56 = arith.constant 0 : index
      %99 = vector.load %arg6[%c20, %c0_55, %c0_56] : memref<24x16x4xbf16, #tpu.memory_space<vmem>>, vector<1x16x4xbf16>
      %100 = vector.shape_cast %99 : vector<1x16x4xbf16> to vector<16x4xbf16>
      %101 = vector.shape_cast %98 : vector<16x4xbf16> to vector<1x16x4xbf16>
      tpu.vector_store %arg6[%c20, %c0_55, %c0_56], %101 {strides = array<i32>} : memref<24x16x4xbf16, #tpu.memory_space<vmem>>, vector<1x16x4xbf16>,
      %102 = vector.extract_strided_slice %17 {offsets = [0, 84], sizes = [16, 4], strides = [1, 1]} : vector<16x96xbf16> to vector<16x4xbf16>
      %c21 = arith.constant 21 : index
      %c0_57 = arith.constant 0 : index
      %c0_58 = arith.constant 0 : index
      %103 = vector.load %arg6[%c21, %c0_57, %c0_58] : memref<24x16x4xbf16, #tpu.memory_space<vmem>>, vector<1x16x4xbf16>
      %104 = vector.shape_cast %103 : vector<1x16x4xbf16> to vector<16x4xbf16>
      %105 = vector.shape_cast %102 : vector<16x4xbf16> to vector<1x16x4xbf16>
      tpu.vector_store %arg6[%c21, %c0_57, %c0_58], %105 {strides = array<i32>} : memref<24x16x4xbf16, #tpu.memory_space<vmem>>, vector<1x16x4xbf16>,
      %106 = vector.extract_strided_slice %17 {offsets = [0, 88], sizes = [16, 4], strides = [1, 1]} : vector<16x96xbf16> to vector<16x4xbf16>
      %c22 = arith.constant 22 : index
      %c0_59 = arith.constant 0 : index
      %c0_60 = arith.constant 0 : index
      %107 = vector.load %arg6[%c22, %c0_59, %c0_60] : memref<24x16x4xbf16, #tpu.memory_space<vmem>>, vector<1x16x4xbf16>
      %108 = vector.shape_cast %107 : vector<1x16x4xbf16> to vector<16x4xbf16>
      %109 = vector.shape_cast %106 : vector<16x4xbf16> to vector<1x16x4xbf16>
      tpu.vector_store %arg6[%c22, %c0_59, %c0_60], %109 {strides = array<i32>} : memref<24x16x4xbf16, #tpu.memory_space<vmem>>, vector<1x16x4xbf16>,
      %110 = vector.extract_strided_slice %17 {offsets = [0, 92], sizes = [16, 4], strides = [1, 1]} : vector<16x96xbf16> to vector<16x4xbf16>
      %c23 = arith.constant 23 : index
      %c0_61 = arith.constant 0 : index
      %c0_62 = arith.constant 0 : index
      %111 = vector.load %arg6[%c23, %c0_61, %c0_62] : memref<24x16x4xbf16, #tpu.memory_space<vmem>>, vector<1x16x4xbf16>
      %112 = vector.shape_cast %111 : vector<1x16x4xbf16> to vector<16x4xbf16>
      %113 = vector.shape_cast %110 : vector<16x4xbf16> to vector<1x16x4xbf16>
      tpu.vector_store %arg6[%c23, %c0_61, %c0_62], %113 {strides = array<i32>} : memref<24x16x4xbf16, #tpu.memory_space<vmem>>, vector<1x16x4xbf16>,
    } else {
    }
    return
  }
  func.func @transform_0(%arg0: i32, %arg1: i32, %arg2: i32) -> (i32, i32) {
    %c0_i32 = arith.constant 0 : i32
    return %arg0, %arg2 : i32, i32
  }
  func.func @transform_1(%arg0: i32, %arg1: i32, %arg2: i32) -> (i32, i32) {
    %c0_i32 = arith.constant 0 : i32
    return %arg2, %arg1 : i32, i32
  }
  func.func @transform_2(%arg0: i32, %arg1: i32, %arg2: i32) -> (i32, i32) {
    %c0_i32 = arith.constant 0 : i32
    %c0_i32_0 = arith.constant 0 : i32
    return %c0_i32, %arg1 : i32, i32
  }
  func.func @transform_3(%arg0: i32, %arg1: i32, %arg2: i32) -> (i32, i32, i32) {
    %c0_i32 = arith.constant 0 : i32
    %c0_i32_0 = arith.constant 0 : i32
    return %arg1, %arg0, %c0_i32 : i32, i32, i32
  }
}

</mosaic_0001>

<llo_original>
// kernel: tpu_custom_call.1
$region0: #{tpu_custom_call.1}
  #allocation0 [shape = 'u32[]', space=smem, size = 0x4, offset = 0x4, fixed_abs, tag = 'smem constant byte address 0x4 - core index']
  #allocation1 [shape = 'u32[144,128]{1,0:T(1,128)}', space=vmem, size = 0x12000, scoped, tag = 'internal scratch']
  #allocation2 [shape = 'f32[16,96]{1,0:T(8,128)}', space=vmem, size = 0x2000, scoped, tag = 'scratch operand']
  %s0 = inlined_call_operand.hbm [shape: f32[16,32], index: 0, kind: input, shape index: {}]
  %s1 = inlined_call_operand.hbm [shape: bf16[32,96], index: 1, kind: input, shape index: {}]
  %s2 = inlined_call_operand.vmem [shape: f32[1,96], index: 2, kind: input, shape index: {}]
  %s3 = inlined_call_operand.vmem [shape: bf16[24,16,4], index: 3, kind: output, shape index: {}]
  %s4 = sld [smem:[#allocation0]]
  $region38: #{tpu_custom_call.1} parent=0
    _
  %s6 = ssub.s32 1, %s4
  %s7 = scalar_select 0, %s6, %s4
  $region1: #{tpu_custom_call.1} parent=0
    #allocation3 [shape = 'u8[8192]{0}', space=vmem, size = 0x2000, scoped, tag = 'input window, operand 0, single buffered']
    #allocation4 [shape = 's32[1]{0}', space=sflag, size = 0x4, scoped, tag = 'scoped memory for tpu_custom_call.1']
    #allocation5 [shape = 'u8[8192]{0}', space=vmem, size = 0x2000, scoped, tag = 'input window, operand 1, single buffered']
    #allocation6 [shape = 's32[1]{0}', space=sflag, size = 0x4, scoped, tag = 'scoped memory for tpu_custom_call.1']
    %8 = vsyncpa [#allocation4], 0
    %9 = vsyncpa [#allocation6], 0
    // Predicated region
    $region2: #{tpu_custom_call.1} parent=1 // pred_check
      _
    $region3: #{tpu_custom_call.1} parent=1 // pred_check_branch
      %11 = sbr.rel (0) target = $region5
    $region4: #{tpu_custom_call.1} parent=1 // pred_region
      %s13 = ssub.s32 256, 256
      %14 = vsyncadd [#allocation4], %s13
      %s15 = sshll.u32 [#allocation3], 4
      %s16 = int_to_ptr.vmem [resolvable:$true] %s15
      %21 = dma.hbm_to_vmem [thread:$0]  %s0, 256, %s16, [#allocation4], 128, 128, 8
    $region5: #{tpu_custom_call.1} parent=1 // pred_fallthru
      _
    // Predicated region
    $region6: #{tpu_custom_call.1} parent=1 // pred_check
      _
    $region7: #{tpu_custom_call.1} parent=1 // pred_check_branch
      %23 = sbr.rel (0) target = $region9
    $region8: #{tpu_custom_call.1} parent=1 // pred_region
      %s25 = ssub.s32 256, 256
      %26 = vsyncadd [#allocation6], %s25
      %s27 = sshll.u32 [#allocation5], 4
      %s28 = int_to_ptr.vmem [resolvable:$true] %s27
      %33 = dma.hbm_to_vmem [thread:$0]  %s1, 256, %s28, [#allocation6], 64, 64, 4
    $region9: #{tpu_custom_call.1} parent=1 // pred_fallthru
      _
    // Predicated region
    $region10: #{tpu_custom_call.1} parent=1 // pred_check
      _
    $region11: #{tpu_custom_call.1} parent=1 // pred_check_branch
      %35 = sbr.rel (0) target = $region13
    $region12: #{tpu_custom_call.1} parent=1 // pred_region
      _
    $region13: #{tpu_custom_call.1} parent=1 // pred_fallthru
      _
    // Predicated region
    $region14: #{tpu_custom_call.1} parent=1 // pred_check
      _
    $region15: #{tpu_custom_call.1} parent=1 // pred_check_branch
      %37 = sbr.rel (0) target = $region17
    $region16: #{tpu_custom_call.1} parent=1 // pred_region
      %38 = dma.done [#allocation4], 256
    $region17: #{tpu_custom_call.1} parent=1 // pred_fallthru
      _
    // Predicated region
    $region18: #{tpu_custom_call.1} parent=1 // pred_check
      _
    $region19: #{tpu_custom_call.1} parent=1 // pred_check_branch
      %40 = sbr.rel (0) target = $region21
    $region20: #{tpu_custom_call.1} parent=1 // pred_region
      %41 = dma.done [#allocation6], 256
    $region21: #{tpu_custom_call.1} parent=1 // pred_fallthru
      _
    %p43 = scmp.eq.s32.totalorder 0, 0
    // Predicated region
    $region22: #{tpu_custom_call.1} parent=1 // pred_check
      %p44 = pneg %p43
    $region23: #{tpu_custom_call.1} parent=1 // pred_check_branch
      %46 = sbr.rel (%p44) target = $region25
    $region24: #{tpu_custom_call.1} parent=1 // pred_region
      %vm47 = vcmask 785408
      %48 = vst.msk [vmem:[#allocation2] sm:$0xff] %vm47, 0.0
      %49 = vst.msk [vmem:[#allocation2 + $0x8] sm:$0xff] %vm47, 0.0
    $region25: #{tpu_custom_call.1} parent=1 // pred_fallthru
      _
    %v50 = vld [vmem:[#allocation3] sm:$0xff]
    %v51 = vld [vmem:[#allocation3 + $0x8] sm:$0xff]
    %v52 = vpack.c.bf16 %v51, %v50
    %v53 = vld [vmem:[#allocation5] sm:$0xf]
    %v54 = vld [vmem:[#allocation5 + $0x4] sm:$0xf]
    %v55 = vld [vmem:[#allocation5 + $0x8] sm:$0xf]
    %v56 = vld [vmem:[#allocation5 + $0xc] sm:$0xf]
    %v57 = vld [vmem:[#allocation2] sm:$0xff]
    %v58 = vld [vmem:[#allocation2 + $0x8] sm:$0xff]
    %v63 = vunpack.c.l.b16 %v53
    %v64 = vunpack.c.l.b16 %v54
    %v65 = vunpack.c.l.b16 %v55
    %v66 = vunpack.c.l.b16 %v56
    %v67 = vpack.c.b16 %v64, %v63
    %v68 = vpack.c.b16 %v66, %v65
    %vm71 = vcmask 261120
    %v73 = vsel %vm71, %v52, 0
    %75 = vmatprep.subr.bf16.mxu0 0
    %76 = vmatpush1.bf16.msra.mxu0 %v67
    %77 = vmatprep.subr.bf16.mxu0 0
    %78 = vmatpush1.bf16.msra.mxu0 %v68
    %79 = vmatprep.subr.bf16.mxu0 0
    %80 = vmatpush1.bf16.msra.mxu0 0
    %81 = vmatprep.subr.bf16.mxu0 0
    %82 = vmatpush1.bf16.msra.mxu0 0
    %83 = vmatprep.subr.bf16.mxu0 0
    %84 = vmatpush1.bf16.msra.mxu0 0
    %85 = vmatprep.subr.bf16.mxu0 0
    %86 = vmatpush1.bf16.msra.mxu0 0
    %87 = vmatprep.subr.bf16.mxu0 0
    %88 = vmatpush1.bf16.msra.mxu0 0
    %89 = vmatprep.subr.bf16.mxu0 0
    %90 = vmatpush1.bf16.msra.mxu0 0
    %91 = vmatprep.subr.bf16.mxu0 0
    %92 = vmatpush1.bf16.msra.mxu0 0
    %93 = vmatprep.subr.bf16.mxu0 0
    %94 = vmatpush1.bf16.msra.mxu0 0
    %95 = vmatprep.subr.bf16.mxu0 0
    %96 = vmatpush1.bf16.msra.mxu0 0
    %97 = vmatprep.subr.bf16.mxu0 0
    %98 = vmatpush1.bf16.msra.mxu0 0
    %99 = vmatprep.subr.bf16.mxu0 0
    %100 = vmatpush1.bf16.msra.mxu0 0
    %101 = vmatprep.subr.bf16.mxu0 0
    %102 = vmatpush1.bf16.msra.mxu0 0
    %103 = vmatprep.subr.bf16.mxu0 0
    %104 = vmatpush1.bf16.msra.mxu0 0
    %105 = vmatprep.subr.bf16.mxu0 0
    %106 = vmatpush1.bf16.msra.mxu0 0
    %107 = vmatprep.mubr.bf16.mxu0 0
    %108 = vmatmul.mubr.bf16.gmra.mrb[0].mxu0 %v73
    %v109 = vpop.f32.mrb[0].mxu0
    %v110 = vadd.f32 0.0, %v109
    %v111 = vpop.f32.mrb[0].mxu0
    %v112 = vpop.f32.mrb[0].mxu0
    %v113 = vadd.f32 0.0, %v112
    %v114 = vpop.f32.mrb[0].mxu0
    %115 = vdwg.mxu0
    %v116 = vadd.f32 %v57, %v110
    %v117 = vadd.f32 %v58, %v113
    %vm118 = vcmask 785408
    %119 = vst.msk [vmem:[#allocation2] sm:$0xff] %vm118, %v116
    %120 = vst.msk [vmem:[#allocation2 + $0x8] sm:$0xff] %vm118, %v117
    // Predicated region
    $region26: #{tpu_custom_call.1} parent=1 // pred_check
      %p121 = pneg %p43
    $region27: #{tpu_custom_call.1} parent=1 // pred_check_branch
      %123 = sbr.rel (%p121) target = $region29
    $region28: #{tpu_custom_call.1} parent=1 // pred_region
      %v124 = vld [vmem:[#allocation2] sm:$0xff]
      %v125 = vld [vmem:[#allocation2 + $0x8] sm:$0xff]
      %v126 = vld [vmem:[%s2] sm:$0x1]
      %v128 = vlaneseq
      %v129 = vshrl.u32 %v128, 7
      %v130 = vsub.s32 0, %v129
      %v131 = vrot.slane %v126, %v130
      %v133 = vadd.f32 %v124, %v131
      %v134 = vadd.f32 %v125, %v131
      %v135 = vpack.c.bf16 %v134, %v133
      %v137 = vunpack.c.l.b16 %v135
      %v138 = vunpack.c.h.b16 %v135
      %v139 = vpack.c.b16 %v137, %v137
      %v140 = vpack.c.b16 %v138, %v138
      %vm143 = vcmask 27648
      %144 = vst.msk [vmem:[%s3] sm:$0xf] %vm143, %v139
      %145 = vst.msk [vmem:[%s3 + $0x4] sm:$0xf] %vm143, %v140
      %146 = vrot.lane.b32.xlu0 %v139, 124
      %v147 = vpop.permute.xlu0 %146
      %148 = vrot.lane.b32.xlu0 %v140, 124
      %v149 = vpop.permute.xlu0 %148
      %s152 = scalar_lea.vmem %s3, 8
      %153 = vst.msk [vmem:[%s152] sm:$0xf] %vm143, %v147
      %154 = vst.msk [vmem:[%s152 + $0x4] sm:$0xf] %vm143, %v149
      %155 = vrot.lane.b32.xlu0 %v139, 120
      %v156 = vpop.permute.xlu0 %155
      %157 = vrot.lane.b32.xlu0 %v140, 120
      %v158 = vpop.permute.xlu0 %157
      %s161 = scalar_lea.vmem %s3, 16
      %162 = vst.msk [vmem:[%s161] sm:$0xf] %vm143, %v156
      %163 = vst.msk [vmem:[%s161 + $0x4] sm:$0xf] %vm143, %v158
      %164 = vrot.lane.b32.xlu0 %v139, 116
      %v165 = vpop.permute.xlu0 %164
      %166 = vrot.lane.b32.xlu0 %v140, 116
      %v167 = vpop.permute.xlu0 %166
      %s170 = scalar_lea.vmem %s3, 24
      %171 = vst.msk [vmem:[%s170] sm:$0xf] %vm143, %v165
      %172 = vst.msk [vmem:[%s170 + $0x4] sm:$0xf] %vm143, %v167
      %173 = vrot.lane.b32.xlu0 %v139, 112
      %v174 = vpop.permute.xlu0 %173
      %175 = vrot.lane.b32.xlu0 %v140, 112
      %v176 = vpop.permute.xlu0 %175
      %s179 = scalar_lea.vmem %s3, 32
      %180 = vst.msk [vmem:[%s179] sm:$0xf] %vm143, %v174
      %181 = vst.msk [vmem:[%s179 + $0x4] sm:$0xf] %vm143, %v176
      %182 = vrot.lane.b32.xlu0 %v139, 108
      %v183 = vpop.permute.xlu0 %182
      %184 = vrot.lane.b32.xlu0 %v140, 108
      %v185 = vpop.permute.xlu0 %184
      %s188 = scalar_lea.vmem %s3, 40
      %189 = vst.msk [vmem:[%s188] sm:$0xf] %vm143, %v183
      %190 = vst.msk [vmem:[%s188 + $0x4] sm:$0xf] %vm143, %v185
      %191 = vrot.lane.b32.xlu0 %v139, 104
      %v192 = vpop.permute.xlu0 %191
      %193 = vrot.lane.b32.xlu0 %v140, 104
      %v194 = vpop.permute.xlu0 %193
      %s197 = scalar_lea.vmem %s3, 48
      %198 = vst.msk [vmem:[%s197] sm:$0xf] %vm143, %v192
      %199 = vst.msk [vmem:[%s197 + $0x4] sm:$0xf] %vm143, %v194
      %200 = vrot.lane.b32.xlu0 %v139, 100
      %v201 = vpop.permute.xlu0 %200
      %202 = vrot.lane.b32.xlu0 %v140, 100
      %v203 = vpop.permute.xlu0 %202
      %s206 = scalar_lea.vmem %s3, 56
      %207 = vst.msk [vmem:[%s206] sm:$0xf] %vm143, %v201
      %208 = vst.msk [vmem:[%s206 + $0x4] sm:$0xf] %vm143, %v203
      %209 = vrot.lane.b32.xlu0 %v139, 96
      %v210 = vpop.permute.xlu0 %209
      %211 = vrot.lane.b32.xlu0 %v140, 96
      %v212 = vpop.permute.xlu0 %211
      %s215 = scalar_lea.vmem %s3, 64
      %216 = vst.msk [vmem:[%s215] sm:$0xf] %vm143, %v210
      %217 = vst.msk [vmem:[%s215 + $0x4] sm:$0xf] %vm143, %v212
      %218 = vrot.lane.b32.xlu0 %v139, 92
      %v219 = vpop.permute.xlu0 %218
      %220 = vrot.lane.b32.xlu0 %v140, 92
      %v221 = vpop.permute.xlu0 %220
      %s224 = scalar_lea.vmem %s3, 72
      %225 = vst.msk [vmem:[%s224] sm:$0xf] %vm143, %v219
      %226 = vst.msk [vmem:[%s224 + $0x4] sm:$0xf] %vm143, %v221
      %227 = vrot.lane.b32.xlu0 %v139, 88
      %v228 = vpop.permute.xlu0 %227
      %229 = vrot.lane.b32.xlu0 %v140, 88
      %v230 = vpop.permute.xlu0 %229
      %s233 = scalar_lea.vmem %s3, 80
      %234 = vst.msk [vmem:[%s233] sm:$0xf] %vm143, %v228
      %235 = vst.msk [vmem:[%s233 + $0x4] sm:$0xf] %vm143, %v230
      %236 = vrot.lane.b32.xlu0 %v139, 84
      %v237 = vpop.permute.xlu0 %236
      %238 = vrot.lane.b32.xlu0 %v140, 84
      %v239 = vpop.permute.xlu0 %238
      %s242 = scalar_lea.vmem %s3, 88
      %243 = vst.msk [vmem:[%s242] sm:$0xf] %vm143, %v237
      %244 = vst.msk [vmem:[%s242 + $0x4] sm:$0xf] %vm143, %v239
      %245 = vrot.lane.b32.xlu0 %v139, 80
      %v246 = vpop.permute.xlu0 %245
      %247 = vrot.lane.b32.xlu0 %v140, 80
      %v248 = vpop.permute.xlu0 %247
      %s251 = scalar_lea.vmem %s3, 96
      %252 = vst.msk [vmem:[%s251] sm:$0xf] %vm143, %v246
      %253 = vst.msk [vmem:[%s251 + $0x4] sm:$0xf] %vm143, %v248
      %254 = vrot.lane.b32.xlu0 %v139, 76
      %v255 = vpop.permute.xlu0 %254
      %256 = vrot.lane.b32.xlu0 %v140, 76
      %v257 = vpop.permute.xlu0 %256
      %s260 = scalar_lea.vmem %s3, 104
      %261 = vst.msk [vmem:[%s260] sm:$0xf] %vm143, %v255
      %262 = vst.msk [vmem:[%s260 + $0x4] sm:$0xf] %vm143, %v257
      %263 = vrot.lane.b32.xlu0 %v139, 72
      %v264 = vpop.permute.xlu0 %263
      %265 = vrot.lane.b32.xlu0 %v140, 72
      %v266 = vpop.permute.xlu0 %265
      %s269 = scalar_lea.vmem %s3, 112
      %270 = vst.msk [vmem:[%s269] sm:$0xf] %vm143, %v264
      %271 = vst.msk [vmem:[%s269 + $0x4] sm:$0xf] %vm143, %v266
      %272 = vrot.lane.b32.xlu0 %v139, 68
      %v273 = vpop.permute.xlu0 %272
      %274 = vrot.lane.b32.xlu0 %v140, 68
      %v275 = vpop.permute.xlu0 %274
      %s278 = scalar_lea.vmem %s3, 120
      %279 = vst.msk [vmem:[%s278] sm:$0xf] %vm143, %v273
      %280 = vst.msk [vmem:[%s278 + $0x4] sm:$0xf] %vm143, %v275
      %281 = vrot.lane.b32.xlu0 %v139, 64
      %v282 = vpop.permute.xlu0 %281
      %283 = vrot.lane.b32.xlu0 %v140, 64
      %v284 = vpop.permute.xlu0 %283
      %s287 = scalar_lea.vmem %s3, 128
      %288 = vst.msk [vmem:[%s287] sm:$0xf] %vm143, %v282
      %289 = vst.msk [vmem:[%s287 + $0x4] sm:$0xf] %vm143, %v284
      %290 = vrot.lane.b32.xlu0 %v139, 60
      %v291 = vpop.permute.xlu0 %290
      %292 = vrot.lane.b32.xlu0 %v140, 60
      %v293 = vpop.permute.xlu0 %292
      %s296 = scalar_lea.vmem %s3, 136
      %297 = vst.msk [vmem:[%s296] sm:$0xf] %vm143, %v291
      %298 = vst.msk [vmem:[%s296 + $0x4] sm:$0xf] %vm143, %v293
      %299 = vrot.lane.b32.xlu0 %v139, 56
      %v300 = vpop.permute.xlu0 %299
      %301 = vrot.lane.b32.xlu0 %v140, 56
      %v302 = vpop.permute.xlu0 %301
      %s305 = scalar_lea.vmem %s3, 144
      %306 = vst.msk [vmem:[%s305] sm:$0xf] %vm143, %v300
      %307 = vst.msk [vmem:[%s305 + $0x4] sm:$0xf] %vm143, %v302
      %308 = vrot.lane.b32.xlu0 %v139, 52
      %v309 = vpop.permute.xlu0 %308
      %310 = vrot.lane.b32.xlu0 %v140, 52
      %v311 = vpop.permute.xlu0 %310
      %s314 = scalar_lea.vmem %s3, 152
      %315 = vst.msk [vmem:[%s314] sm:$0xf] %vm143, %v309
      %316 = vst.msk [vmem:[%s314 + $0x4] sm:$0xf] %vm143, %v311
      %317 = vrot.lane.b32.xlu0 %v139, 48
      %v318 = vpop.permute.xlu0 %317
      %319 = vrot.lane.b32.xlu0 %v140, 48
      %v320 = vpop.permute.xlu0 %319
      %s323 = scalar_lea.vmem %s3, 160
      %324 = vst.msk [vmem:[%s323] sm:$0xf] %vm143, %v318
      %325 = vst.msk [vmem:[%s323 + $0x4] sm:$0xf] %vm143, %v320
      %326 = vrot.lane.b32.xlu0 %v139, 44
      %v327 = vpop.permute.xlu0 %326
      %328 = vrot.lane.b32.xlu0 %v140, 44
      %v329 = vpop.permute.xlu0 %328
      %s332 = scalar_lea.vmem %s3, 168
      %333 = vst.msk [vmem:[%s332] sm:$0xf] %vm143, %v327
      %334 = vst.msk [vmem:[%s332 + $0x4] sm:$0xf] %vm143, %v329
      %335 = vrot.lane.b32.xlu0 %v139, 40
      %v336 = vpop.permute.xlu0 %335
      %337 = vrot.lane.b32.xlu0 %v140, 40
      %v338 = vpop.permute.xlu0 %337
      %s341 = scalar_lea.vmem %s3, 176
      %342 = vst.msk [vmem:[%s341] sm:$0xf] %vm143, %v336
      %343 = vst.msk [vmem:[%s341 + $0x4] sm:$0xf] %vm143, %v338
      %344 = vrot.lane.b32.xlu0 %v139, 36
      %v345 = vpop.permute.xlu0 %344
      %346 = vrot.lane.b32.xlu0 %v140, 36
      %v347 = vpop.permute.xlu0 %346
      %s350 = scalar_lea.vmem %s3, 184
      %351 = vst.msk [vmem:[%s350] sm:$0xf] %vm143, %v345
      %352 = vst.msk [vmem:[%s350 + $0x4] sm:$0xf] %vm143, %v347
    $region29: #{tpu_custom_call.1} parent=1 // pred_fallthru
      _
    // Predicated region
    $region30: #{tpu_custom_call.1} parent=1 // pred_check
      _
    $region31: #{tpu_custom_call.1} parent=1 // pred_check_branch
      %354 = sbr.rel (0) target = $region33
    $region32: #{tpu_custom_call.1} parent=1 // pred_region
      _
    $region33: #{tpu_custom_call.1} parent=1 // pred_fallthru
      _
    // Predicated region
    $region34: #{tpu_custom_call.1} parent=1 // pred_check
      _
    $region35: #{tpu_custom_call.1} parent=1 // pred_check_branch
      %356 = sbr.rel (0) target = $region37
    $region36: #{tpu_custom_call.1} parent=1 // pred_region
      _
    $region37: #{tpu_custom_call.1} parent=1 // pred_fallthru
      _
    %357 = vsyncpa [#allocation4], 1
    %358 = vsyncpa [#allocation6], 1

</llo_original>
